<compile_context>
chip_gen: v5e
topology: v5e:2x2
jax: 0.10.0
libtpu: 0.0.40
codegen_flags: <defaults>
</compile_context>

<pallas_src>
import math
from functools import partial

import jax
import jax.numpy as jnp
import numpy as np
from jax import lax
from jax.experimental import pallas as pl
from jax.experimental.pallas import tpu as pltpu


def _round_up(x, m):
    return (x + m - 1) // m * m


def _cdiv(a, b):
    return -(-a // b)


# ----------------------------- Pallas kernel -------------------------------

def _patch_embed_kernel(p_ref, w_ref, params_ref, o_ref, *, eps):
    # p_ref:      (tm, Kp)  im2col patch tile (zero padded along K), bf16/f32
    # w_ref:      (Kp, N)   conv weight reshaped (C*kh*kw padded, embed_dim)
    # params_ref: (8,  N)   f32: row 0 = conv bias, row 1 = gamma, row 2 = beta
    # o_ref:      (tm, N)   output tile (compute dtype)
    y = jnp.dot(p_ref[...], w_ref[...], preferred_element_type=jnp.float32)

    prm = params_ref[...]                 # (8, N) f32, loaded once
    bias = prm[0:1, :]
    gamma = prm[1:2, :]
    beta = prm[2:3, :]
    y = y + bias

    # Two-pass LayerNorm over embed dim (biased variance, torch semantics).
    # Subtracting the mean before the squared reduction avoids the
    # E[y^2]-E[y]^2 cancellation; we need (y - mean) for the output anyway.
    n = y.shape[-1]
    inv_n = 1.0 / n
    mean = jnp.sum(y, axis=-1, keepdims=True) * inv_n
    d = y - mean
    var = jnp.sum(d * d, axis=-1, keepdims=True) * inv_n
    inv_std = lax.rsqrt(var + eps)
    o_ref[...] = (d * inv_std * gamma + beta).astype(o_ref.dtype)


def _select_row_tiling(M, tile_m_req):
    """Pick (tile_m, num_steps) for the row grid.

    - tile big enough that per-step DMA dominates the ~0.35us step overhead
    - >= 2 grid steps for mid/large M (v7x megacore + pipeline overlap),
      >= 4 steps for large M
    - capped at 8192 rows so the double-buffered working set stays well under
      v7x's 32 MiB scoped-VMEM default
    - padding waste bounded by steps*16 rows (tile derived from M, not fixed)
    """
    tile_m_req = max(16, min(int(tile_m_req), 8192))
    steps = max(1, _cdiv(M, tile_m_req))
    if M >= 2048:
        steps = max(steps, 2)
    if M >= 16384:
        steps = max(steps, 4)
    tile_m = _round_up(_cdiv(M, steps), 16)
    return tile_m, steps


def _patch_embed_pallas(patches, w2d, params, *, eps=1e-5, tile_m=4096,
                        out_dtype=jnp.float32):
    M, K = patches.shape
    Kw, N = w2d.shape
    assert K == Kw

    # Lane-align K (zeros don't change the matmul) and tile the rows.
    Kp = _round_up(K, 128)
    tile_m, steps = _select_row_tiling(M, tile_m)
    Mp = tile_m * steps

    # Single merged pad over BOTH axes (one pass at most; typically fuses
    # with the preceding im2col transpose/reshape copy).
    if (Mp, Kp) != (M, K):
        patches = jnp.pad(patches, ((0, Mp - M), (0, Kp - K)))
    if Kp != K:
        w2d = jnp.pad(w2d, ((0, Kp - K), (0, 0)))

    in_bytes = patches.dtype.itemsize
    out_bytes = np.dtype(out_dtype).itemsize
    cost = pl.CostEstimate(
        flops=2 * Mp * Kp * N,
        transcendentals=Mp,                       # one rsqrt per row
        bytes_accessed=(Mp * Kp * in_bytes        # patch reads (dominant)
                        + Kp * N * in_bytes       # weight
                        + 8 * N * 4               # packed bias/gamma/beta
                        + Mp * N * out_bytes))    # output writes

    out = pl.pallas_call(
        partial(_patch_embed_kernel, eps=eps),
        out_shape=jax.ShapeDtypeStruct((Mp, N), out_dtype),
        grid=(steps,),
        in_specs=[
            pl.BlockSpec((tile_m, Kp), lambda i: (i, 0)),  # patches (row tiled)
            pl.BlockSpec((Kp, N), lambda i: (0, 0)),       # weight (resident)
            pl.BlockSpec((8, N), lambda i: (0, 0)),        # packed params
        ],
        out_specs=pl.BlockSpec((tile_m, N), lambda i: (i, 0)),
        compiler_params=pltpu.CompilerParams(
            dimension_semantics=("parallel",)),
        cost_estimate=cost,
    )(patches, w2d, params)
    return out[:M]


# --------------------------- module-level wrapper ---------------------------

class OverlapPatchEmbed:
    """JAX/Pallas re-implementation of the PyTorch OverlapPatchEmbed forward."""

    def __init__(self, img_size=16, patch_size=7, stride=4, in_chans=4,
                 embed_dim=32, key=None, compute_dtype=jnp.bfloat16):
        assert patch_size > stride, "Set larger patch_size than stride"
        self.img_size = (img_size, img_size)
        self.patch_size = (patch_size, patch_size)
        self.stride = stride
        self.in_chans = in_chans
        self.embed_dim = embed_dim
        self.H = img_size // stride
        self.W = img_size // stride
        self.num_patches = self.H * self.W
        self.compute_dtype = compute_dtype

        # Deterministic init (mirrors _init_weights):
        #   conv weight ~ N(0, sqrt(2 / fan_out)), conv bias = 0
        #   LayerNorm weight = 1, bias = 0
        key = jax.random.PRNGKey(0) if key is None else key
        kh, kw = self.patch_size
        fan_out = kh * kw * embed_dim
        std = math.sqrt(2.0 / fan_out)
        self.conv_w = std * jax.random.normal(
            key, (embed_dim, in_chans, kh, kw), dtype=jnp.float32)
        self.conv_b = jnp.zeros((embed_dim,), dtype=jnp.float32)
        self.ln_w = jnp.ones((embed_dim,), dtype=jnp.float32)
        self.ln_b = jnp.zeros((embed_dim,), dtype=jnp.float32)
        self.eps = 1e-5

        # Packed kernel params: one (8, N) f32 operand instead of three (1, N)
        # operands (single pipeline buffer / DMA descriptor per grid step).
        params = jnp.zeros((8, embed_dim), dtype=jnp.float32)
        params = params.at[0].set(self.conv_b)
        params = params.at[1].set(self.ln_w)
        params = params.at[2].set(self.ln_b)
        self.params = params

    def _im2col(self, x):
        # x: (B, C, H, W). Returns (B*Ho*Wo, C*kh*kw) patches and (Ho, Wo).
        # Built from kh*kw strided slices (49 HLO ops total, independent of
        # image size), NOT an O(Ho*Wo) Python loop.
        B, C, H, W = x.shape
        kh, kw = self.patch_size
        s = self.stride
        ph, pw = kh // 2, kw // 2
        xp = jnp.pad(x, ((0, 0), (0, 0), (ph, ph), (pw, pw)))
        Ho = (H + 2 * ph - kh) // s + 1
        Wo = (W + 2 * pw - kw) // s + 1
        cols = []
        for dh in range(kh):
            for dw in range(kw):
                stop_h = dh + (Ho - 1) * s + 1
                stop_w = dw + (Wo - 1) * s + 1
                cols.append(xp[:, :, dh:stop_h:s, dw:stop_w:s])  # (B,C,Ho,Wo)
        # (B, C, kh*kw, Ho, Wo) -> (B, Ho, Wo, C, kh*kw) -> (B*Ho*Wo, C*kh*kw)
        # K ordering is (c, dh, dw) row-major, matching the OIHW weight reshape.
        patches = jnp.stack(cols, axis=2)
        patches = patches.transpose(0, 3, 4, 1, 2).reshape(
            B * Ho * Wo, C * kh * kw)
        return patches, Ho, Wo

    def __call__(self, x, compute_dtype=None, out_dtype=None):
        # x: (B, C, H, W) float32, NCHW (PyTorch layout).
        cd = self.compute_dtype if compute_dtype is None else compute_dtype
        od = cd if out_dtype is None else out_dtype
        B = x.shape[0]
        patches, Ho, Wo = self._im2col(x.astype(cd))
        kh, kw = self.patch_size
        # (embed_dim, C, kh, kw) -> (C*kh*kw, embed_dim); matches im2col order.
        w2d = self.conv_w.reshape(self.embed_dim, self.in_chans * kh * kw).T
        out_flat = _patch_embed_pallas(
            patches, w2d.astype(cd), self.params, eps=self.eps, out_dtype=od)
        out = out_flat.reshape(B, Ho * Wo, self.embed_dim)
        return out, Ho, Wo


# ------------------------------ reference -----------------------------------

def _reference(x, module):
    # Pure-JAX f32 reference: conv2d -> flatten(2).transpose(1,2) -> LayerNorm.
    y = lax.conv_general_dilated(
        x, module.conv_w,
        window_strides=(module.stride, module.stride),
        padding=((module.patch_size[0] // 2,) * 2,
                 (module.patch_size[1] // 2,) * 2),
        dimension_numbers=("NCHW", "OIHW", "NCHW"))
    y = y + module.conv_b[None, :, None, None]
    B, C, Ho, Wo = y.shape
    y = y.reshape(B, C, Ho * Wo).transpose(0, 2, 1)
    mean = jnp.mean(y, axis=-1, keepdims=True)
    var = jnp.mean((y - mean) ** 2, axis=-1, keepdims=True)
    y = (y - mean) / jnp.sqrt(var + module.eps)
    return y * module.ln_w + module.ln_b, Ho, Wo


# -------------------------------- main ---------------------------------------

if __name__ == "__main__":
    key = jax.random.PRNGKey(0)
    k_w, k_x = jax.random.split(key)

    B, C, HW = 2, 4, 16
    module = OverlapPatchEmbed(img_size=HW, patch_size=7, stride=4,
                               in_chans=C, embed_dim=32, key=k_w)

    x = jax.random.normal(k_x, (B, C, HW, HW), dtype=jnp.float32)

    # f32 operand / f32 output path: tight check against the pure-JAX reference.
    out_f32, H, W = module(x, compute_dtype=jnp.float32, out_dtype=jnp.float32)
    out_f32 = jax.block_until_ready(out_f32)

    # Default perf config: bf16 operands + bf16 output, f32 accumulation & LN.
    out_bf16, Hb, Wb = module(x)
    out_bf16 = jax.block_until_ready(out_bf16)

    ref, Hr, Wr = _reference(x, module)
    ref = jax.block_until_ready(ref)

    assert (H, W) == (Hb, Wb) == (Hr, Wr) == (4, 4)
    assert out_f32.shape == (B, H * W, 32)
    assert out_bf16.shape == (B, H * W, 32)
    assert out_bf16.dtype == jnp.bfloat16
    np.testing.assert_allclose(np.asarray(out_f32), np.asarray(ref),
                               rtol=1e-4, atol=1e-4)
    np.testing.assert_allclose(np.asarray(out_bf16.astype(jnp.float32)),
                               np.asarray(ref), rtol=3e-2, atol=3e-2)

    print("KERNEL_OK")
</pallas_src>

<mosaic_0001>
module attributes {stable_mosaic.version = 11 : i64} {
  func.func @_patch_embed_kernel(%arg0: i32, %arg1: memref<32x256xf32, #tpu.memory_space<vmem>>, %arg2: memref<256x32xf32, #tpu.memory_space<vmem>>, %arg3: memref<8x32xf32, #tpu.memory_space<vmem>>, %arg4: memref<32x32xf32, #tpu.memory_space<vmem>>) attributes {dimension_semantics = [#tpu.dimension_semantics<parallel>], iteration_bounds = array<i64: 1>, scalar_prefetch = 0 : i64, scratch_operands = 0 : i64, tpu.core_type = #tpu.core_type<tc>, window_params = [{transform_indices = @transform_0, window_bounds = array<i64: 32, 256>}, {pipeline_mode = #tpu.pipeline_mode<synchronous>, transform_indices = @transform_1, window_bounds = array<i64: 256, 32>}, {pipeline_mode = #tpu.pipeline_mode<synchronous>, transform_indices = @transform_2, window_bounds = array<i64: 8, 32>}, {transform_indices = @transform_3, window_bounds = array<i64: 32, 32>}]} {
    %c0 = arith.constant 0 : index
    %c0_0 = arith.constant 0 : index
    %0 = vector.load %arg1[%c0, %c0_0] : memref<32x256xf32, #tpu.memory_space<vmem>>, vector<32x256xf32>
    %c0_1 = arith.constant 0 : index
    %c0_2 = arith.constant 0 : index
    %1 = vector.load %arg2[%c0_1, %c0_2] : memref<256x32xf32, #tpu.memory_space<vmem>>, vector<256x32xf32>
    %cst = arith.constant dense<0.000000e+00> : vector<32x32xf32>
    %2 = tpu.matmul %0, %1, %cst {dimension_numbers = #tpu.dot_dimension_numbers<[1], [0], [0], [1], [0, 0, 1, 1], [], []>} : vector<32x256xf32>, vector<256x32xf32>, vector<32x32xf32> -> vector<32x32xf32>
    %c0_3 = arith.constant 0 : index
    %c0_4 = arith.constant 0 : index
    %3 = vector.load %arg3[%c0_3, %c0_4] : memref<8x32xf32, #tpu.memory_space<vmem>>, vector<8x32xf32>
    %4 = vector.extract_strided_slice %3 {offsets = [0, 0], sizes = [1, 32], strides = [1, 1]} : vector<8x32xf32> to vector<1x32xf32>
    %5 = vector.extract_strided_slice %3 {offsets = [1, 0], sizes = [1, 32], strides = [1, 1]} : vector<8x32xf32> to vector<1x32xf32>
    %6 = vector.extract_strided_slice %3 {offsets = [2, 0], sizes = [1, 32], strides = [1, 1]} : vector<8x32xf32> to vector<1x32xf32>
    %7 = vector.broadcast %4 : vector<1x32xf32> to vector<32x32xf32>
    %8 = arith.addf %2, %7 : vector<32x32xf32>
    %cst_5 = arith.constant dense<0.000000e+00> : vector<32xf32>
    %9 = vector.multi_reduction <add>, %8, %cst_5 [1] : vector<32x32xf32> to vector<32xf32>
    %10 = vector.shape_cast %9 : vector<32xf32> to vector<32x1xf32>
    %cst_6 = arith.constant 3.125000e-02 : f32
    %11 = vector.broadcast %cst_6 : f32 to vector<32x1xf32>
    %12 = arith.mulf %10, %11 : vector<32x1xf32>
    %13 = vector.broadcast %12 : vector<32x1xf32> to vector<32x32xf32>
    %14 = arith.subf %8, %13 : vector<32x32xf32>
    %15 = arith.mulf %14, %14 : vector<32x32xf32>
    %cst_7 = arith.constant dense<0.000000e+00> : vector<32xf32>
    %16 = vector.multi_reduction <add>, %15, %cst_7 [1] : vector<32x32xf32> to vector<32xf32>
    %17 = vector.shape_cast %16 : vector<32xf32> to vector<32x1xf32>
    %cst_8 = arith.constant 3.125000e-02 : f32
    %18 = vector.broadcast %cst_8 : f32 to vector<32x1xf32>
    %19 = arith.mulf %17, %18 : vector<32x1xf32>
    %cst_9 = arith.constant 9.99999974E-6 : f32
    %20 = vector.broadcast %cst_9 : f32 to vector<32x1xf32>
    %21 = arith.addf %19, %20 : vector<32x1xf32>
    %22 = math.rsqrt %21 : vector<32x1xf32>
    %23 = vector.broadcast %22 : vector<32x1xf32> to vector<32x32xf32>
    %24 = arith.mulf %14, %23 : vector<32x32xf32>
    %25 = vector.broadcast %5 : vector<1x32xf32> to vector<32x32xf32>
    %26 = arith.mulf %24, %25 : vector<32x32xf32>
    %27 = vector.broadcast %6 : vector<1x32xf32> to vector<32x32xf32>
    %28 = arith.addf %26, %27 : vector<32x32xf32>
    %c0_10 = arith.constant 0 : index
    %c0_11 = arith.constant 0 : index
    %29 = vector.load %arg4[%c0_10, %c0_11] : memref<32x32xf32, #tpu.memory_space<vmem>>, vector<32x32xf32>
    tpu.vector_store %arg4[%c0_10, %c0_11], %28 {strides = array<i32>} : memref<32x32xf32, #tpu.memory_space<vmem>>, vector<32x32xf32>,
    return
  }
  func.func @transform_0(%arg0: i32) -> (i32, i32) {
    %c0_i32 = arith.constant 0 : i32
    %c0_i32_0 = arith.constant 0 : i32
    return %arg0, %c0_i32 : i32, i32
  }
  func.func @transform_1(%arg0: i32) -> (i32, i32) {
    %c0_i32 = arith.constant 0 : i32
    %c0_i32_0 = arith.constant 0 : i32
    %c0_i32_1 = arith.constant 0 : i32
    return %c0_i32, %c0_i32_0 : i32, i32
  }
  func.func @transform_2(%arg0: i32) -> (i32, i32) {
    %c0_i32 = arith.constant 0 : i32
    %c0_i32_0 = arith.constant 0 : i32
    %c0_i32_1 = arith.constant 0 : i32
    return %c0_i32, %c0_i32_0 : i32, i32
  }
  func.func @transform_3(%arg0: i32) -> (i32, i32) {
    %c0_i32 = arith.constant 0 : i32
    %c0_i32_0 = arith.constant 0 : i32
    return %arg0, %c0_i32 : i32, i32
  }
}

</mosaic_0001>

<llo_original>
// kernel: tpu_custom_call.1
$region0: #{tpu_custom_call.1}
  #allocation0 [shape = 'u32[]', space=smem, size = 0x4, offset = 0x4, fixed_abs, tag = 'smem constant byte address 0x4 - core index']
  #allocation1 [shape = 'u32[72,128]{1,0:T(1,128)}', space=vmem, size = 0x9000, scoped, tag = 'internal scratch']
  %s0 = inlined_call_operand.vmem [shape: f32[32,256], index: 0, kind: input, shape index: {}]
  %s1 = inlined_call_operand.vmem [shape: f32[256,32], index: 1, kind: input, shape index: {}]
  %s2 = inlined_call_operand.vmem [shape: f32[8,32], index: 2, kind: input, shape index: {}]
  %s3 = inlined_call_operand.hbm [shape: f32[32,32], index: 3, kind: output, shape index: {}]
  %s4 = sld [smem:[#allocation0]]
  $region22: #{tpu_custom_call.1} parent=0
    _
  %s6 = ssub.s32 1, %s4
  %s7 = scalar_select 0, %s6, %s4
  $region1: #{tpu_custom_call.1} parent=0
    #allocation2 [shape = 'u8[16384]{0}', space=vmem, size = 0x4000, scoped, tag = 'output window, operand 0, single buffered']
    #allocation3 [shape = 's32[1]{0}', space=sflag, size = 0x4, scoped, tag = 'scoped memory for tpu_custom_call.1']
    %8 = vsyncpa [#allocation3], 0
    // Predicated region
    $region2: #{tpu_custom_call.1} parent=1 // pred_check
      _
    $region3: #{tpu_custom_call.1} parent=1 // pred_check_branch
      %10 = sbr.rel (0) target = $region5
    $region4: #{tpu_custom_call.1} parent=1 // pred_region
      _
    $region5: #{tpu_custom_call.1} parent=1 // pred_fallthru
      _
    // Predicated region
    $region6: #{tpu_custom_call.1} parent=1 // pred_check
      _
    $region7: #{tpu_custom_call.1} parent=1 // pred_check_branch
      %12 = sbr.rel (0) target = $region9
    $region8: #{tpu_custom_call.1} parent=1 // pred_region
      _
    $region9: #{tpu_custom_call.1} parent=1 // pred_fallthru
      _
    // Predicated region
    $region10: #{tpu_custom_call.1} parent=1 // pred_check
      _
    $region11: #{tpu_custom_call.1} parent=1 // pred_check_branch
      %14 = sbr.rel (0) target = $region13
    $region12: #{tpu_custom_call.1} parent=1 // pred_region
      _
    $region13: #{tpu_custom_call.1} parent=1 // pred_fallthru
      _
    %v15 = vld [vmem:[%s0] sm:$0xff]
    %v16 = vld [vmem:[%s0 + $0x8] sm:$0xff]
    %v17 = vld [vmem:[%s0 + $0x10] sm:$0xff]
    %v18 = vld [vmem:[%s0 + $0x18] sm:$0xff]
    %v19 = vld [vmem:[%s0 + $0x20] sm:$0xff]
    %v20 = vld [vmem:[%s0 + $0x28] sm:$0xff]
    %v21 = vld [vmem:[%s0 + $0x30] sm:$0xff]
    %v22 = vld [vmem:[%s0 + $0x38] sm:$0xff]
    %v23 = vld [vmem:[%s1] sm:$0xff]
    %v24 = vld [vmem:[%s1 + $0x8] sm:$0xff]
    %v25 = vld [vmem:[%s1 + $0x10] sm:$0xff]
    %v26 = vld [vmem:[%s1 + $0x18] sm:$0xff]
    %v27 = vld [vmem:[%s1 + $0x20] sm:$0xff]
    %v28 = vld [vmem:[%s1 + $0x28] sm:$0xff]
    %v29 = vld [vmem:[%s1 + $0x30] sm:$0xff]
    %v30 = vld [vmem:[%s1 + $0x38] sm:$0xff]
    %v31 = vld [vmem:[%s1 + $0x40] sm:$0xff]
    %v32 = vld [vmem:[%s1 + $0x48] sm:$0xff]
    %v33 = vld [vmem:[%s1 + $0x50] sm:$0xff]
    %v34 = vld [vmem:[%s1 + $0x58] sm:$0xff]
    %v35 = vld [vmem:[%s1 + $0x60] sm:$0xff]
    %v36 = vld [vmem:[%s1 + $0x68] sm:$0xff]
    %v37 = vld [vmem:[%s1 + $0x70] sm:$0xff]
    %v38 = vld [vmem:[%s1 + $0x78] sm:$0xff]
    %v39 = vld [vmem:[%s1 + $0x80] sm:$0xff]
    %v40 = vld [vmem:[%s1 + $0x88] sm:$0xff]
    %v41 = vld [vmem:[%s1 + $0x90] sm:$0xff]
    %v42 = vld [vmem:[%s1 + $0x98] sm:$0xff]
    %v43 = vld [vmem:[%s1 + $0xa0] sm:$0xff]
    %v44 = vld [vmem:[%s1 + $0xa8] sm:$0xff]
    %v45 = vld [vmem:[%s1 + $0xb0] sm:$0xff]
    %v46 = vld [vmem:[%s1 + $0xb8] sm:$0xff]
    %v47 = vld [vmem:[%s1 + $0xc0] sm:$0xff]
    %v48 = vld [vmem:[%s1 + $0xc8] sm:$0xff]
    %v49 = vld [vmem:[%s1 + $0xd0] sm:$0xff]
    %v50 = vld [vmem:[%s1 + $0xd8] sm:$0xff]
    %v51 = vld [vmem:[%s1 + $0xe0] sm:$0xff]
    %v52 = vld [vmem:[%s1 + $0xe8] sm:$0xff]
    %v53 = vld [vmem:[%s1 + $0xf0] sm:$0xff]
    %v54 = vld [vmem:[%s1 + $0xf8] sm:$0xff]
    %v55 = vld [vmem:[%s2] sm:$0xff]
    %v56 = vperm.slane %v55, 0
    %57 = vmatpush.msra.mxu0 %v38
    %58 = vmatpush.msra.mxu0 %v37
    %59 = vmatpush.msra.mxu0 %v36
    %60 = vmatpush.msra.mxu0 %v35
    %61 = vmatpush.msra.mxu0 %v34
    %62 = vmatpush.msra.mxu0 %v33
    %63 = vmatpush.msra.mxu0 %v32
    %64 = vmatpush.msra.mxu0 %v31
    %65 = vmatpush.msra.mxu0 %v30
    %66 = vmatpush.msra.mxu0 %v29
    %67 = vmatpush.msra.mxu0 %v28
    %68 = vmatpush.msra.mxu0 %v27
    %69 = vmatpush.msra.mxu0 %v26
    %70 = vmatpush.msra.mxu0 %v25
    %71 = vmatpush.msra.mxu0 %v24
    %72 = vmatpush.msra.mxu0 %v23
    %73 = vmatmul.f32.gmra.mxu0 %v15
    %v74 = vpop.f32.mrf.mxu0
    %v75 = vadd.f32 %v56, %v74
    %76 = vmatmul.f32.gmra.mxu0 %v17
    %v77 = vpop.f32.mrf.mxu0
    %v78 = vadd.f32 %v56, %v77
    %79 = vmatmul.f32.gmra.mxu0 %v19
    %v80 = vpop.f32.mrf.mxu0
    %v81 = vadd.f32 %v56, %v80
    %82 = vmatmul.f32.gmra.mxu0 %v21
    %v83 = vpop.f32.mrf.mxu0
    %v84 = vadd.f32 %v56, %v83
    %85 = vdwg.mxu0
    %86 = vmatpush.msra.mxu0 %v54
    %87 = vmatpush.msra.mxu0 %v53
    %88 = vmatpush.msra.mxu0 %v52
    %89 = vmatpush.msra.mxu0 %v51
    %90 = vmatpush.msra.mxu0 %v50
    %91 = vmatpush.msra.mxu0 %v49
    %92 = vmatpush.msra.mxu0 %v48
    %93 = vmatpush.msra.mxu0 %v47
    %94 = vmatpush.msra.mxu0 %v46
    %95 = vmatpush.msra.mxu0 %v45
    %96 = vmatpush.msra.mxu0 %v44
    %97 = vmatpush.msra.mxu0 %v43
    %98 = vmatpush.msra.mxu0 %v42
    %99 = vmatpush.msra.mxu0 %v41
    %100 = vmatpush.msra.mxu0 %v40
    %101 = vmatpush.msra.mxu0 %v39
    %102 = vmatmul.f32.gmra.mxu0 %v16
    %v103 = vpop.f32.mrf.mxu0
    %v104 = vadd.f32 %v75, %v103
    %105 = vmatmul.f32.gmra.mxu0 %v18
    %v106 = vpop.f32.mrf.mxu0
    %v107 = vadd.f32 %v78, %v106
    %108 = vmatmul.f32.gmra.mxu0 %v20
    %v109 = vpop.f32.mrf.mxu0
    %v110 = vadd.f32 %v81, %v109
    %111 = vmatmul.f32.gmra.mxu0 %v22
    %v112 = vpop.f32.mrf.mxu0
    %v113 = vadd.f32 %v84, %v112
    %114 = vdwg.mxu0
    %vm115 = vcmask 261120
    %v116 = vsel %vm115, %v104, 0.0
    %117 = vadd.xlane.f32.xlu0 %v116
    %v118 = vpop.xlane.xlu0 %117
    %v119 = vsel %vm115, %v107, 0.0
    %120 = vadd.xlane.f32.xlu0 %v119
    %v121 = vpop.xlane.xlu0 %120
    %v122 = vsel %vm115, %v110, 0.0
    %123 = vadd.xlane.f32.xlu0 %v122
    %v124 = vpop.xlane.xlu0 %123
    %v125 = vsel %vm115, %v113, 0.0
    %126 = vadd.xlane.f32.xlu0 %v125
    %v127 = vpop.xlane.xlu0 %126
    %v128 = vmul.f32 %v118, 0.03125
    %v129 = vmul.f32 %v121, 0.03125
    %v130 = vmul.f32 %v124, 0.03125
    %v131 = vmul.f32 %v127, 0.03125
    %v132 = vsub.f32 %v104, %v128
    %v133 = vsub.f32 %v107, %v129
    %v134 = vsub.f32 %v110, %v130
    %v135 = vsub.f32 %v113, %v131
    %v136 = vmul.f32 %v132, %v132
    %v137 = vmul.f32 %v133, %v133
    %v138 = vmul.f32 %v134, %v134
    %v139 = vmul.f32 %v135, %v135
    %v140 = vsel %vm115, %v136, 0.0
    %141 = vadd.xlane.f32.xlu0 %v140
    %v142 = vpop.xlane.xlu0 %141
    %v143 = vsel %vm115, %v137, 0.0
    %144 = vadd.xlane.f32.xlu0 %v143
    %v145 = vpop.xlane.xlu0 %144
    %v146 = vsel %vm115, %v138, 0.0
    %147 = vadd.xlane.f32.xlu0 %v146
    %v148 = vpop.xlane.xlu0 %147
    %v149 = vsel %vm115, %v139, 0.0
    %150 = vadd.xlane.f32.xlu0 %v149
    %v151 = vpop.xlane.xlu0 %150
    %v152 = vmul.f32 %v142, 0.03125
    %v153 = vmul.f32 %v145, 0.03125
    %v154 = vmul.f32 %v148, 0.03125
    %v155 = vmul.f32 %v151, 0.03125
    %v156 = vadd.f32 %v152, 1e-05
    %v157 = vadd.f32 %v153, 1e-05
    %v158 = vadd.f32 %v154, 1e-05
    %v159 = vadd.f32 %v155, 1e-05
    %v160 = vrsqrt.pop %v156
    %v161 = vmul.f32 %v160, %v156
    %v162 = vmul.f32 %v161, %v160
    %v163 = vmul.f32 0.5, %v162
    %v164 = vsub.f32 1.5, %v163
    %v165 = vmul.f32 %v160, %v164
    %vm166 = vweird.f32 %v156
    %vm167 = vweird.f32 %v160
    %vm168 = vmor %vm166, %vm167
    %v169 = vsel %vm168, %v160, %v165
    %v170 = vrsqrt.pop %v157
    %v171 = vmul.f32 %v170, %v157
    %v172 = vmul.f32 %v171, %v170
    %v173 = vmul.f32 0.5, %v172
    %v174 = vsub.f32 1.5, %v173
    %v175 = vmul.f32 %v170, %v174
    %vm176 = vweird.f32 %v157
    %vm177 = vweird.f32 %v170
    %vm178 = vmor %vm176, %vm177
    %v179 = vsel %vm178, %v170, %v175
    %v180 = vrsqrt.pop %v158
    %v181 = vmul.f32 %v180, %v158
    %v182 = vmul.f32 %v181, %v180
    %v183 = vmul.f32 0.5, %v182
    %v184 = vsub.f32 1.5, %v183
    %v185 = vmul.f32 %v180, %v184
    %vm186 = vweird.f32 %v158
    %vm187 = vweird.f32 %v180
    %vm188 = vmor %vm186, %vm187
    %v189 = vsel %vm188, %v180, %v185
    %v190 = vrsqrt.pop %v159
    %v191 = vmul.f32 %v190, %v159
    %v192 = vmul.f32 %v191, %v190
    %v193 = vmul.f32 0.5, %v192
    %v194 = vsub.f32 1.5, %v193
    %v195 = vmul.f32 %v190, %v194
    %vm196 = vweird.f32 %v159
    %vm197 = vweird.f32 %v190
    %vm198 = vmor %vm196, %vm197
    %v199 = vsel %vm198, %v190, %v195
    %v200 = vmul.f32 %v132, %v169
    %v201 = vmul.f32 %v133, %v179
    %v202 = vmul.f32 %v134, %v189
    %v203 = vmul.f32 %v135, %v199
    %v204 = vperm.slane %v55, 1
    %v205 = vmul.f32 %v200, %v204
    %v206 = vmul.f32 %v201, %v204
    %v207 = vmul.f32 %v202, %v204
    %v208 = vmul.f32 %v203, %v204
    %v209 = vperm.slane %v55, 2
    %v210 = vadd.f32 %v205, %v209
    %v211 = vadd.f32 %v206, %v209
    %v212 = vadd.f32 %v207, %v209
    %v213 = vadd.f32 %v208, %v209
    %214 = vst.msk [vmem:[#allocation2] sm:$0xff] %vm115, %v210
    %215 = vst.msk [vmem:[#allocation2 + $0x8] sm:$0xff] %vm115, %v211
    %216 = vst.msk [vmem:[#allocation2 + $0x10] sm:$0xff] %vm115, %v212
    %217 = vst.msk [vmem:[#allocation2 + $0x18] sm:$0xff] %vm115, %v213
    // Predicated region
    $region14: #{tpu_custom_call.1} parent=1 // pred_check
      _
    $region15: #{tpu_custom_call.1} parent=1 // pred_check_branch
      %219 = sbr.rel (0) target = $region17
    $region16: #{tpu_custom_call.1} parent=1 // pred_region
      %221 = vsyncadd [#allocation3], 0
      %s222 = sshll.u32 [#allocation2], 4
      %s223 = int_to_ptr.vmem [resolvable:$true] %s222
      %s224 = sshll.u32 %s3, 4
      %s225 = int_to_ptr.hbm [resolvable:$true] %s224
      %230 = dma.vmem_to_hbm [thread:$0]  %s223, 512, %s225, [#allocation3], 128, 128, 8
    $region17: #{tpu_custom_call.1} parent=1 // pred_fallthru
      _
    // Predicated region
    $region18: #{tpu_custom_call.1} parent=1 // pred_check
      _
    $region19: #{tpu_custom_call.1} parent=1 // pred_check_branch
      %232 = sbr.rel (0) target = $region21
    $region20: #{tpu_custom_call.1} parent=1 // pred_region
      %234 = dma.done [#allocation3], 512
    $region21: #{tpu_custom_call.1} parent=1 // pred_fallthru
      _
    %235 = vsyncpa [#allocation3], 1

</llo_original>
